<compile_context>
chip_gen: v5e
topology: v5e:2x2
jax: 0.10.0
libtpu: 0.0.40
codegen_flags: <defaults>
</compile_context>

<pallas_src>
import functools

import jax
import jax.numpy as jnp
from jax import lax
from jax.experimental import pallas as pl
from jax.experimental.pallas import tpu as pltpu

IN_FEATURES = 768                       # fixed by the module: GCNConv(768, hidden)


def _round_up(v, m):
    return (v + m - 1) // m * m


def _vmem_limit_bytes():
    """Generation-aware scoped-VMEM budget.

    ~64 MiB on v5e/v6e (128 MiB physical VMEM); 32 MiB on v7x (64 MiB per TC) or
    whenever the hardware cannot be queried (e.g. interpret mode on CPU).
    """
    try:
        cap = pltpu.get_tpu_info().vmem_capacity_bytes
        return int(min(cap // 2, 64 * 1024 * 1024))
    except Exception:
        return 32 * 1024 * 1024


# ---------------------------------------------------------------------------
# Kernel 1: XW = X @ W1   (computed once; bf16 operands, f32 MXU accumulation)
# ---------------------------------------------------------------------------
def _xw_kernel(x_ref, w1_ref, o_ref):
    o_ref[...] = jnp.dot(x_ref[...], w1_ref[...],
                         preferred_element_type=jnp.float32).astype(o_ref.dtype)


# ---------------------------------------------------------------------------
# Kernel 2: out = log_softmax((relu(A_norm @ XW + b1) [* dropout_mask]) @ W2 + b2)
# ---------------------------------------------------------------------------
def _agg_kernel(*refs, out_c, tile_k, xw_resident, has_mask):
    if has_mask:
        a_ref, xw_ref, b1_ref, w2_ref, b2_ref, mask_ref, o_ref, acc_ref = refs
    else:
        a_ref, xw_ref, b1_ref, w2_ref, b2_ref, o_ref, acc_ref = refs
        mask_ref = None

    k = pl.program_id(1)

    @pl.when(k == 0)
    def _():
        acc_ref[...] = jnp.zeros_like(acc_ref)

    if xw_resident:
        # XW lives fully in VMEM (DMA'd from HBM exactly once); slice the k-chunk.
        off = pl.multiple_of(k * tile_k, 128)
        xw_blk = xw_ref[pl.ds(off, tile_k), :]
    else:
        xw_blk = xw_ref[...]

    acc_ref[...] += jnp.dot(a_ref[...], xw_blk,
                            preferred_element_type=jnp.float32)

    @pl.when(k == pl.num_programs(1) - 1)
    def _():
        h = jnp.maximum(acc_ref[...] + b1_ref[...], 0.0)          # bias + ReLU (f32)
        if mask_ref is not None:
            h = h * mask_ref[...]                                  # inverted dropout {0, 2}
        y = jnp.dot(h.astype(jnp.bfloat16), w2_ref[...],
                    preferred_element_type=jnp.float32) + b2_ref[...]
        # mask the lane-padding class columns so they don't perturb the normalization
        col = lax.broadcasted_iota(jnp.int32, y.shape, 1)
        y = jnp.where(col < out_c, y, -1e30)
        m = jnp.max(y, axis=-1, keepdims=True)
        z = y - m
        lse = jnp.log(jnp.sum(jnp.exp(z), axis=-1, keepdims=True))
        o_ref[...] = (z - lse).astype(o_ref.dtype)


# ---------------------------------------------------------------------------
# Glue + wrapper
# ---------------------------------------------------------------------------
def build_norm_adj(edge_index, num_nodes):
    """Dense D^{-1/2}(A + I)D^{-1/2}, matching PyG gcn_norm with self-loops."""
    # TODO(synk): a sparse segment-sum GCN aggregation kernel would avoid the dense A_norm.
    row, col = edge_index[0], edge_index[1]
    a = jnp.zeros((num_nodes, num_nodes), jnp.float32)
    a = a.at[col, row].add(1.0)                       # message j -> i; dense A[i, j]
    a = a + jnp.eye(num_nodes, dtype=jnp.float32)     # self-loops
    deg = jnp.sum(a, axis=1)
    dinv = jnp.where(deg > 0, 1.0 / jnp.sqrt(deg), 0.0)
    return dinv[:, None] * a * dinv[None, :]


def dumb_gnn_forward(x, edge_index, params, *, training=False, rng_key=None):
    n, f = x.shape
    w1, b1, w2, b2 = params["w1"], params["b1"], params["w2"], params["b2"]
    h_dim, c_dim = w1.shape[1], w2.shape[1]
    vmem_limit = _vmem_limit_bytes()

    # ---- padded / tiled geometry (lane-dense: F, H, C padded to multiples of 128)
    f_pad = _round_up(f, 128)
    h_pad = _round_up(h_dim, 128)
    c_pad = _round_up(c_dim, 128)
    n128 = _round_up(n, 128)

    tile_n = min(512, n128)                 # output-row tile ("parallel")
    # v7x megacore: make the parallel row axis produce >=2 tiles when the graph allows
    if n128 > 128 and n128 // tile_n < 2:
        tile_n = max(128, _round_up(n128 // 2, 128))
    tile_k = min(1024, n128)                # A-column reduction tile ("arbitrary", last)

    n_rows = _round_up(n, tile_n)           # padded rows of A / output
    n_cols = _round_up(n, tile_k)           # padded cols of A / rows of XW

    # keep XW fully resident in VMEM if it (double-buffered) + ~8 MiB of other
    # streams fits the scoped budget; otherwise stream a (tile_k, h_pad) block per k
    xw_bytes = n_cols * h_pad * 2
    xw_resident = (2 * xw_bytes + (8 << 20)) <= vmem_limit

    # ---- glue: dense normalized adjacency, then bf16 operands (f32 accumulate in-kernel)
    a_norm = build_norm_adj(edge_index, n)
    a_p = jnp.zeros((n_rows, n_cols), jnp.bfloat16).at[:n, :n].set(a_norm.astype(jnp.bfloat16))
    x_p = jnp.zeros((n_cols, f_pad), jnp.bfloat16).at[:n, :f].set(x.astype(jnp.bfloat16))
    w1_p = jnp.zeros((f_pad, h_pad), jnp.bfloat16).at[:f, :h_dim].set(w1.astype(jnp.bfloat16))
    b1_p = jnp.zeros((1, h_pad), jnp.float32).at[:, :h_dim].set(
        b1.reshape(1, h_dim).astype(jnp.float32))
    w2_p = jnp.zeros((h_pad, c_pad), jnp.bfloat16).at[:h_dim, :c_dim].set(w2.astype(jnp.bfloat16))
    b2_p = jnp.zeros((1, c_pad), jnp.float32).at[:, :c_dim].set(
        b2.reshape(1, c_dim).astype(jnp.float32))

    # ---- kernel 1: XW = X @ W1, computed once (hoisted out of the A reduction)
    tm1 = tile_k                            # up to 1024 rows / step; X tile ~1.5 MiB bf16
    xw = pl.pallas_call(
        _xw_kernel,
        out_shape=jax.ShapeDtypeStruct((n_cols, h_pad), jnp.bfloat16),
        grid=(n_cols // tm1,),
        in_specs=[pl.BlockSpec((tm1, f_pad), lambda i: (i, 0)),
                  pl.BlockSpec((f_pad, h_pad), lambda i: (0, 0))],   # W1 resident
        out_specs=pl.BlockSpec((tm1, h_pad), lambda i: (i, 0)),
        compiler_params=pltpu.CompilerParams(
            dimension_semantics=("parallel",),
            vmem_limit_bytes=vmem_limit),
        cost_estimate=pl.CostEstimate(
            flops=2 * n_cols * f_pad * h_pad,
            transcendentals=0,
            bytes_accessed=2 * (n_cols * f_pad + f_pad * h_pad + n_cols * h_pad)),
    )(x_p, w1_p)

    # ---- dropout mask (inverted, p = 0.5), generated OUTSIDE the kernel (portable)
    if training:
        if rng_key is None:
            rng_key = jax.random.PRNGKey(0)
        keep = jax.random.bernoulli(rng_key, 0.5, (n, h_dim))
        mask = jnp.where(keep, 2.0, 0.0).astype(jnp.float32)
        mask_p = jnp.zeros((n_rows, h_pad), jnp.float32).at[:n, :h_dim].set(mask)

    # ---- kernel 2: tiled aggregation A_norm @ XW + fused epilogue
    if xw_resident:
        xw_spec = pl.BlockSpec((n_cols, h_pad), lambda i, k: (0, 0))   # DMA'd once
    else:
        xw_spec = pl.BlockSpec((tile_k, h_pad), lambda i, k: (k, 0))   # streamed over k

    in_specs = [
        pl.BlockSpec((tile_n, tile_k), lambda i, k: (i, k)),   # A tile (dominant HBM stream)
        xw_spec,                                               # XW
        pl.BlockSpec((1, h_pad), lambda i, k: (0, 0)),         # b1 (resident)
        pl.BlockSpec((h_pad, c_pad), lambda i, k: (0, 0)),     # W2 (resident)
        pl.BlockSpec((1, c_pad), lambda i, k: (0, 0)),         # b2 (resident)
    ]
    args = [a_p, xw, b1_p, w2_p, b2_p]
    if training:
        in_specs.append(pl.BlockSpec((tile_n, h_pad), lambda i, k: (i, 0)))  # dropout mask
        args.append(mask_p)

    kernel = functools.partial(_agg_kernel, out_c=c_dim, tile_k=tile_k,
                               xw_resident=xw_resident, has_mask=training)

    grid_spec = pltpu.PrefetchScalarGridSpec(
        num_scalar_prefetch=0,
        grid=(n_rows // tile_n, n_cols // tile_k),
        in_specs=in_specs,
        out_specs=pl.BlockSpec((tile_n, c_pad), lambda i, k: (i, 0)),
        scratch_shapes=[pltpu.VMEM((tile_n, h_pad), jnp.float32)],
    )

    n_row_tiles = n_rows // tile_n
    xw_stream_bytes = 2 * n_cols * h_pad * (1 if xw_resident else n_row_tiles)
    mask_bytes = 4 * n_rows * h_pad if training else 0
    cost = pl.CostEstimate(
        flops=2 * n_rows * n_cols * h_pad + 2 * n_rows * h_pad * c_pad,
        transcendentals=n_rows * (c_pad + 1),
        bytes_accessed=(2 * n_rows * n_cols                      # A (bf16), read once
                        + xw_stream_bytes
                        + mask_bytes
                        + 2 * h_pad * c_pad + 4 * n_rows * c_pad))

    out_pad = pl.pallas_call(
        kernel,
        out_shape=jax.ShapeDtypeStruct((n_rows, c_pad), jnp.float32),
        grid_spec=grid_spec,
        compiler_params=pltpu.CompilerParams(
            dimension_semantics=("parallel", "arbitrary"),
            vmem_limit_bytes=vmem_limit),
        cost_estimate=cost,
    )(*args)

    return out_pad[:n, :c_dim]


def init_params(key, hidden_channels, out_channels):
    k1, k2, k3 = jax.random.split(key, 3)
    # GCNConv internal Linear: glorot init, bias zeros (PyG defaults)
    limit1 = (6.0 / (IN_FEATURES + hidden_channels)) ** 0.5
    w1 = jax.random.uniform(k1, (IN_FEATURES, hidden_channels), jnp.float32,
                            -limit1, limit1)
    b1 = jnp.zeros((1, hidden_channels), jnp.float32)
    # torch.nn.Linear: uniform(-1/sqrt(fan_in), 1/sqrt(fan_in)) for weight and bias
    limit2 = 1.0 / (hidden_channels ** 0.5)
    w2 = jax.random.uniform(k2, (hidden_channels, out_channels), jnp.float32,
                            -limit2, limit2)
    b2 = jax.random.uniform(k3, (1, out_channels), jnp.float32, -limit2, limit2)
    return {"w1": w1, "b1": b1, "w2": w2, "b2": b2}


if __name__ == "__main__":
    key = jax.random.PRNGKey(0)
    k_x, k_p, k_r, k_o = jax.random.split(key, 4)

    num_nodes = 16
    num_edges = 48
    hidden_channels = 32
    out_channels = 8

    x = jax.random.normal(k_x, (num_nodes, IN_FEATURES), jnp.float32)
    # random directed edges with no self-loops
    src = jax.random.randint(k_r, (num_edges,), 0, num_nodes)
    off = jax.random.randint(k_o, (num_edges,), 1, num_nodes)
    dst = (src + off) % num_nodes
    edge_index = jnp.stack([src, dst], axis=0).astype(jnp.int32)

    params = init_params(k_p, hidden_channels, out_channels)

    # ---- eval path (dropout = identity)
    out = dumb_gnn_forward(x, edge_index, params, training=False)
    jax.block_until_ready(out)
    assert out.shape == (num_nodes, out_channels)
    assert bool(jnp.all(jnp.isfinite(out)))
    # rows of log_softmax must exp-sum to 1
    assert jnp.allclose(jnp.exp(out).sum(-1), 1.0, atol=1e-4)

    # ---- plain-JAX reference mirroring the kernel's bf16-operand / f32-accumulate math
    a_ref = build_norm_adj(edge_index, num_nodes)
    xw_ref = jnp.dot(x.astype(jnp.bfloat16), params["w1"].astype(jnp.bfloat16),
                     preferred_element_type=jnp.float32)
    h_ref = jnp.maximum(
        jnp.dot(a_ref.astype(jnp.bfloat16), xw_ref.astype(jnp.bfloat16),
                preferred_element_type=jnp.float32) + params["b1"], 0.0)
    y_ref = jnp.dot(h_ref.astype(jnp.bfloat16), params["w2"].astype(jnp.bfloat16),
                    preferred_element_type=jnp.float32) + params["b2"]
    ref = y_ref - jax.scipy.special.logsumexp(y_ref, axis=-1, keepdims=True)
    assert float(jnp.max(jnp.abs(out - ref))) < 2e-2

    # ---- training path (dropout mask generated outside the kernel; deterministic)
    drop_key = jax.random.PRNGKey(123)
    out_tr = dumb_gnn_forward(x, edge_index, params, training=True, rng_key=drop_key)
    jax.block_until_ready(out_tr)
    assert out_tr.shape == (num_nodes, out_channels)
    assert bool(jnp.all(jnp.isfinite(out_tr)))
    assert jnp.allclose(jnp.exp(out_tr).sum(-1), 1.0, atol=1e-4)

    # exact same mask as the wrapper generates -> direct reference check
    keep = jax.random.bernoulli(drop_key, 0.5, (num_nodes, hidden_channels))
    h_tr = h_ref * jnp.where(keep, 2.0, 0.0)
    y_tr = jnp.dot(h_tr.astype(jnp.bfloat16), params["w2"].astype(jnp.bfloat16),
                   preferred_element_type=jnp.float32) + params["b2"]
    ref_tr = y_tr - jax.scipy.special.logsumexp(y_tr, axis=-1, keepdims=True)
    assert float(jnp.max(jnp.abs(out_tr - ref_tr))) < 2e-2

    print("KERNEL_OK")
</pallas_src>

<mosaic_0001>
module attributes {stable_mosaic.version = 11 : i64} {
  func.func @_xw_kernel(%arg0: i32, %arg1: memref<128x768xbf16, #tpu.memory_space<vmem>>, %arg2: memref<768x128xbf16, #tpu.memory_space<vmem>>, %arg3: memref<128x128xbf16, #tpu.memory_space<vmem>>) attributes {dimension_semantics = [#tpu.dimension_semantics<parallel>], iteration_bounds = array<i64: 1>, scalar_prefetch = 0 : i64, scratch_operands = 0 : i64, tpu.core_type = #tpu.core_type<tc>, window_params = [{transform_indices = @transform_0, window_bounds = array<i64: 128, 768>}, {pipeline_mode = #tpu.pipeline_mode<synchronous>, transform_indices = @transform_1, window_bounds = array<i64: 768, 128>}, {transform_indices = @transform_2, window_bounds = array<i64: 128, 128>}]} {
    %c0 = arith.constant 0 : index
    %c0_0 = arith.constant 0 : index
    %0 = vector.load %arg1[%c0, %c0_0] : memref<128x768xbf16, #tpu.memory_space<vmem>>, vector<128x768xbf16>
    %c0_1 = arith.constant 0 : index
    %c0_2 = arith.constant 0 : index
    %1 = vector.load %arg2[%c0_1, %c0_2] : memref<768x128xbf16, #tpu.memory_space<vmem>>, vector<768x128xbf16>
    %cst = arith.constant dense<0.000000e+00> : vector<128x128xf32>
    %2 = tpu.matmul %0, %1, %cst {dimension_numbers = #tpu.dot_dimension_numbers<[1], [0], [0], [1], [0, 0, 1, 1], [], []>} : vector<128x768xbf16>, vector<768x128xbf16>, vector<128x128xf32> -> vector<128x128xf32>
    %3 = arith.truncf %2 : vector<128x128xf32> to vector<128x128xbf16>
    %c0_3 = arith.constant 0 : index
    %c0_4 = arith.constant 0 : index
    %4 = vector.load %arg3[%c0_3, %c0_4] : memref<128x128xbf16, #tpu.memory_space<vmem>>, vector<128x128xbf16>
    tpu.vector_store %arg3[%c0_3, %c0_4], %3 {strides = array<i32>} : memref<128x128xbf16, #tpu.memory_space<vmem>>, vector<128x128xbf16>,
    return
  }
  func.func @transform_0(%arg0: i32) -> (i32, i32) {
    %c0_i32 = arith.constant 0 : i32
    %c0_i32_0 = arith.constant 0 : i32
    return %arg0, %c0_i32 : i32, i32
  }
  func.func @transform_1(%arg0: i32) -> (i32, i32) {
    %c0_i32 = arith.constant 0 : i32
    %c0_i32_0 = arith.constant 0 : i32
    %c0_i32_1 = arith.constant 0 : i32
    return %c0_i32, %c0_i32_0 : i32, i32
  }
  func.func @transform_2(%arg0: i32) -> (i32, i32) {
    %c0_i32 = arith.constant 0 : i32
    %c0_i32_0 = arith.constant 0 : i32
    return %arg0, %c0_i32 : i32, i32
  }
}

</mosaic_0001>

<llo_original>
// kernel: tpu_custom_call.1
$region0: #{tpu_custom_call.1}
  #allocation0 [shape = 'u32[]', space=smem, size = 0x4, offset = 0x4, fixed_abs, tag = 'smem constant byte address 0x4 - core index']
  #allocation1 [shape = 'u32[72,128]{1,0:T(1,128)}', space=vmem, size = 0x9000, scoped, tag = 'internal scratch']
  %s0 = inlined_call_operand.hbm [shape: bf16[128,768], index: 0, kind: input, shape index: {}]
  %s1 = inlined_call_operand.hbm [shape: bf16[768,128], index: 1, kind: input, shape index: {}]
  %s2 = inlined_call_operand.hbm [shape: bf16[128,128], index: 2, kind: output, shape index: {}]
  %s3 = sld [smem:[#allocation0]]
  $region26: #{tpu_custom_call.1} parent=0
    _
  %s5 = ssub.s32 1, %s3
  %s6 = scalar_select 0, %s5, %s3
  $region1: #{tpu_custom_call.1} parent=0
    #allocation2 [shape = 'u8[196608]{0}', space=vmem, size = 0x30000, scoped, tag = 'input window, operand 0, single buffered']
    #allocation3 [shape = 's32[1]{0}', space=sflag, size = 0x4, scoped, tag = 'scoped memory for tpu_custom_call.1']
    #allocation4 [shape = 's32[1]{0}', space=sflag, size = 0x4, scoped, tag = 'scoped memory for tpu_custom_call.1']
    #allocation5 [shape = 'u8[196608]{0}', space=vmem, size = 0x30000, scoped, tag = 'input window, operand 1, single buffered']
    #allocation6 [shape = 's32[1]{0}', space=sflag, size = 0x4, scoped, tag = 'scoped memory for tpu_custom_call.1']
    #allocation7 [shape = 'u8[32768]{0}', space=vmem, size = 0x8000, scoped, tag = 'output window, operand 0, single buffered']
    %7 = vsyncpa [#allocation3], 0
    %8 = vsyncpa [#allocation6], 0
    %9 = vsyncpa [#allocation4], 0
    // Predicated region
    $region2: #{tpu_custom_call.1} parent=1 // pred_check
      _
    $region3: #{tpu_custom_call.1} parent=1 // pred_check_branch
      %11 = sbr.rel (0) target = $region5
    $region4: #{tpu_custom_call.1} parent=1 // pred_region
      %13 = vsyncadd [#allocation3], 0
      %s14 = sshll.u32 %s0, 4
      %s15 = int_to_ptr.hbm [resolvable:$true] %s14
      %s16 = sshll.u32 [#allocation2], 4
      %s17 = int_to_ptr.vmem [resolvable:$true] %s16
      %22 = dma.hbm_to_vmem [thread:$0]  %s15, 6144, %s17, [#allocation3], 384, 384, 24
    $region5: #{tpu_custom_call.1} parent=1 // pred_fallthru
      _
    // Predicated region
    $region6: #{tpu_custom_call.1} parent=1 // pred_check
      _
    $region7: #{tpu_custom_call.1} parent=1 // pred_check_branch
      %24 = sbr.rel (0) target = $region9
    $region8: #{tpu_custom_call.1} parent=1 // pred_region
      %26 = vsyncadd [#allocation6], 0
      %s27 = sshll.u32 %s1, 4
      %s28 = int_to_ptr.hbm [resolvable:$true] %s27
      %s29 = sshll.u32 [#allocation5], 4
      %s30 = int_to_ptr.vmem [resolvable:$true] %s29
      %35 = dma.hbm_to_vmem [thread:$0]  %s28, 6144, %s30, [#allocation6], 64, 64, 4
    $region9: #{tpu_custom_call.1} parent=1 // pred_fallthru
      _
    // Predicated region
    $region10: #{tpu_custom_call.1} parent=1 // pred_check
      _
    $region11: #{tpu_custom_call.1} parent=1 // pred_check_branch
      %37 = sbr.rel (0) target = $region13
    $region12: #{tpu_custom_call.1} parent=1 // pred_region
      %39 = dma.done [#allocation3], 6144
    $region13: #{tpu_custom_call.1} parent=1 // pred_fallthru
      _
    // Predicated region
    $region14: #{tpu_custom_call.1} parent=1 // pred_check
      _
    $region15: #{tpu_custom_call.1} parent=1 // pred_check_branch
      %41 = sbr.rel (0) target = $region17
    $region16: #{tpu_custom_call.1} parent=1 // pred_region
      %43 = dma.done [#allocation6], 6144
    $region17: #{tpu_custom_call.1} parent=1 // pred_fallthru
      _
    %v44 = vld [vmem:[#allocation2] sm:$0xff]
    %v45 = vld [vmem:[#allocation2 + $0x8] sm:$0xff]
    %v46 = vld [vmem:[#allocation2 + $0x10] sm:$0xff]
    %v47 = vld [vmem:[#allocation2 + $0x18] sm:$0xff]
    %v48 = vld [vmem:[#allocation2 + $0x20] sm:$0xff]
    %v49 = vld [vmem:[#allocation2 + $0x28] sm:$0xff]
    %v50 = vld [vmem:[#allocation2 + $0x30] sm:$0xff]
    %v51 = vld [vmem:[#allocation2 + $0x38] sm:$0xff]
    %v52 = vld [vmem:[#allocation2 + $0x40] sm:$0xff]
    %v53 = vld [vmem:[#allocation2 + $0x48] sm:$0xff]
    %v54 = vld [vmem:[#allocation2 + $0x50] sm:$0xff]
    %v55 = vld [vmem:[#allocation2 + $0x58] sm:$0xff]
    %v56 = vld [vmem:[#allocation2 + $0x60] sm:$0xff]
    %v57 = vld [vmem:[#allocation2 + $0x68] sm:$0xff]
    %v58 = vld [vmem:[#allocation2 + $0x70] sm:$0xff]
    %v59 = vld [vmem:[#allocation2 + $0x78] sm:$0xff]
    %v60 = vld [vmem:[#allocation2 + $0x80] sm:$0xff]
    %v61 = vld [vmem:[#allocation2 + $0x88] sm:$0xff]
    %v62 = vld [vmem:[#allocation2 + $0x90] sm:$0xff]
    %v63 = vld [vmem:[#allocation2 + $0x98] sm:$0xff]
    %v64 = vld [vmem:[#allocation2 + $0xa0] sm:$0xff]
    %v65 = vld [vmem:[#allocation2 + $0xa8] sm:$0xff]
    %v66 = vld [vmem:[#allocation2 + $0xb0] sm:$0xff]
    %v67 = vld [vmem:[#allocation2 + $0xb8] sm:$0xff]
    %v68 = vld [vmem:[#allocation2 + $0xc0] sm:$0xff]
    %v69 = vld [vmem:[#allocation2 + $0xc8] sm:$0xff]
    %v70 = vld [vmem:[#allocation2 + $0xd0] sm:$0xff]
    %v71 = vld [vmem:[#allocation2 + $0xd8] sm:$0xff]
    %v72 = vld [vmem:[#allocation2 + $0xe0] sm:$0xff]
    %v73 = vld [vmem:[#allocation2 + $0xe8] sm:$0xff]
    %v74 = vld [vmem:[#allocation2 + $0xf0] sm:$0xff]
    %v75 = vld [vmem:[#allocation2 + $0xf8] sm:$0xff]
    %v76 = vld [vmem:[#allocation2 + $0x100] sm:$0xff]
    %v77 = vld [vmem:[#allocation2 + $0x108] sm:$0xff]
    %v78 = vld [vmem:[#allocation2 + $0x110] sm:$0xff]
    %v79 = vld [vmem:[#allocation2 + $0x118] sm:$0xff]
    %v80 = vld [vmem:[#allocation2 + $0x120] sm:$0xff]
    %v81 = vld [vmem:[#allocation2 + $0x128] sm:$0xff]
    %v82 = vld [vmem:[#allocation2 + $0x130] sm:$0xff]
    %v83 = vld [vmem:[#allocation2 + $0x138] sm:$0xff]
    %v84 = vld [vmem:[#allocation2 + $0x140] sm:$0xff]
    %v85 = vld [vmem:[#allocation2 + $0x148] sm:$0xff]
    %v86 = vld [vmem:[#allocation2 + $0x150] sm:$0xff]
    %v87 = vld [vmem:[#allocation2 + $0x158] sm:$0xff]
    %v88 = vld [vmem:[#allocation2 + $0x160] sm:$0xff]
    %v89 = vld [vmem:[#allocation2 + $0x168] sm:$0xff]
    %v90 = vld [vmem:[#allocation2 + $0x170] sm:$0xff]
    %v91 = vld [vmem:[#allocation2 + $0x178] sm:$0xff]
    %v92 = vld [vmem:[#allocation5] sm:$0xf]
    %v93 = vld [vmem:[#allocation5 + $0x4] sm:$0xf]
    %v94 = vld [vmem:[#allocation5 + $0x8] sm:$0xf]
    %v95 = vld [vmem:[#allocation5 + $0xc] sm:$0xf]
    %v96 = vld [vmem:[#allocation5 + $0x10] sm:$0xf]
    %v97 = vld [vmem:[#allocation5 + $0x14] sm:$0xf]
    %v98 = vld [vmem:[#allocation5 + $0x18] sm:$0xf]
    %v99 = vld [vmem:[#allocation5 + $0x1c] sm:$0xf]
    %v100 = vld [vmem:[#allocation5 + $0x20] sm:$0xf]
    %v101 = vld [vmem:[#allocation5 + $0x24] sm:$0xf]
    %v102 = vld [vmem:[#allocation5 + $0x28] sm:$0xf]
    %v103 = vld [vmem:[#allocation5 + $0x2c] sm:$0xf]
    %v104 = vld [vmem:[#allocation5 + $0x30] sm:$0xf]
    %v105 = vld [vmem:[#allocation5 + $0x34] sm:$0xf]
    %v106 = vld [vmem:[#allocation5 + $0x38] sm:$0xf]
    %v107 = vld [vmem:[#allocation5 + $0x3c] sm:$0xf]
    %v108 = vld [vmem:[#allocation5 + $0x40] sm:$0xf]
    %v109 = vld [vmem:[#allocation5 + $0x44] sm:$0xf]
    %v110 = vld [vmem:[#allocation5 + $0x48] sm:$0xf]
    %v111 = vld [vmem:[#allocation5 + $0x4c] sm:$0xf]
    %v112 = vld [vmem:[#allocation5 + $0x50] sm:$0xf]
    %v113 = vld [vmem:[#allocation5 + $0x54] sm:$0xf]
    %v114 = vld [vmem:[#allocation5 + $0x58] sm:$0xf]
    %v115 = vld [vmem:[#allocation5 + $0x5c] sm:$0xf]
    %v116 = vld [vmem:[#allocation5 + $0x60] sm:$0xf]
    %v117 = vld [vmem:[#allocation5 + $0x64] sm:$0xf]
    %v118 = vld [vmem:[#allocation5 + $0x68] sm:$0xf]
    %v119 = vld [vmem:[#allocation5 + $0x6c] sm:$0xf]
    %v120 = vld [vmem:[#allocation5 + $0x70] sm:$0xf]
    %v121 = vld [vmem:[#allocation5 + $0x74] sm:$0xf]
    %v122 = vld [vmem:[#allocation5 + $0x78] sm:$0xf]
    %v123 = vld [vmem:[#allocation5 + $0x7c] sm:$0xf]
    %v124 = vld [vmem:[#allocation5 + $0x80] sm:$0xf]
    %v125 = vld [vmem:[#allocation5 + $0x84] sm:$0xf]
    %v126 = vld [vmem:[#allocation5 + $0x88] sm:$0xf]
    %v127 = vld [vmem:[#allocation5 + $0x8c] sm:$0xf]
    %v128 = vld [vmem:[#allocation5 + $0x90] sm:$0xf]
    %v129 = vld [vmem:[#allocation5 + $0x94] sm:$0xf]
    %v130 = vld [vmem:[#allocation5 + $0x98] sm:$0xf]
    %v131 = vld [vmem:[#allocation5 + $0x9c] sm:$0xf]
    %v132 = vld [vmem:[#allocation5 + $0xa0] sm:$0xf]
    %v133 = vld [vmem:[#allocation5 + $0xa4] sm:$0xf]
    %v134 = vld [vmem:[#allocation5 + $0xa8] sm:$0xf]
    %v135 = vld [vmem:[#allocation5 + $0xac] sm:$0xf]
    %v136 = vld [vmem:[#allocation5 + $0xb0] sm:$0xf]
    %v137 = vld [vmem:[#allocation5 + $0xb4] sm:$0xf]
    %v138 = vld [vmem:[#allocation5 + $0xb8] sm:$0xf]
    %v139 = vld [vmem:[#allocation5 + $0xbc] sm:$0xf]
    %v140 = vld [vmem:[#allocation5 + $0xc0] sm:$0xf]
    %v141 = vld [vmem:[#allocation5 + $0xc4] sm:$0xf]
    %v142 = vld [vmem:[#allocation5 + $0xc8] sm:$0xf]
    %v143 = vld [vmem:[#allocation5 + $0xcc] sm:$0xf]
    %v144 = vld [vmem:[#allocation5 + $0xd0] sm:$0xf]
    %v145 = vld [vmem:[#allocation5 + $0xd4] sm:$0xf]
    %v146 = vld [vmem:[#allocation5 + $0xd8] sm:$0xf]
    %v147 = vld [vmem:[#allocation5 + $0xdc] sm:$0xf]
    %v148 = vld [vmem:[#allocation5 + $0xe0] sm:$0xf]
    %v149 = vld [vmem:[#allocation5 + $0xe4] sm:$0xf]
    %v150 = vld [vmem:[#allocation5 + $0xe8] sm:$0xf]
    %v151 = vld [vmem:[#allocation5 + $0xec] sm:$0xf]
    %v152 = vld [vmem:[#allocation5 + $0xf0] sm:$0xf]
    %v153 = vld [vmem:[#allocation5 + $0xf4] sm:$0xf]
    %v154 = vld [vmem:[#allocation5 + $0xf8] sm:$0xf]
    %v155 = vld [vmem:[#allocation5 + $0xfc] sm:$0xf]
    %v156 = vld [vmem:[#allocation5 + $0x100] sm:$0xf]
    %v157 = vld [vmem:[#allocation5 + $0x104] sm:$0xf]
    %v158 = vld [vmem:[#allocation5 + $0x108] sm:$0xf]
    %v159 = vld [vmem:[#allocation5 + $0x10c] sm:$0xf]
    %v160 = vld [vmem:[#allocation5 + $0x110] sm:$0xf]
    %v161 = vld [vmem:[#allocation5 + $0x114] sm:$0xf]
    %v162 = vld [vmem:[#allocation5 + $0x118] sm:$0xf]
    %v163 = vld [vmem:[#allocation5 + $0x11c] sm:$0xf]
    %v164 = vld [vmem:[#allocation5 + $0x120] sm:$0xf]
    %v165 = vld [vmem:[#allocation5 + $0x124] sm:$0xf]
    %v166 = vld [vmem:[#allocation5 + $0x128] sm:$0xf]
    %v167 = vld [vmem:[#allocation5 + $0x12c] sm:$0xf]
    %v168 = vld [vmem:[#allocation5 + $0x130] sm:$0xf]
    %v169 = vld [vmem:[#allocation5 + $0x134] sm:$0xf]
    %v170 = vld [vmem:[#allocation5 + $0x138] sm:$0xf]
    %v171 = vld [vmem:[#allocation5 + $0x13c] sm:$0xf]
    %v172 = vld [vmem:[#allocation5 + $0x140] sm:$0xf]
    %v173 = vld [vmem:[#allocation5 + $0x144] sm:$0xf]
    %v174 = vld [vmem:[#allocation5 + $0x148] sm:$0xf]
    %v175 = vld [vmem:[#allocation5 + $0x14c] sm:$0xf]
    %v176 = vld [vmem:[#allocation5 + $0x150] sm:$0xf]
    %v177 = vld [vmem:[#allocation5 + $0x154] sm:$0xf]
    %v178 = vld [vmem:[#allocation5 + $0x158] sm:$0xf]
    %v179 = vld [vmem:[#allocation5 + $0x15c] sm:$0xf]
    %v180 = vld [vmem:[#allocation5 + $0x160] sm:$0xf]
    %v181 = vld [vmem:[#allocation5 + $0x164] sm:$0xf]
    %v182 = vld [vmem:[#allocation5 + $0x168] sm:$0xf]
    %v183 = vld [vmem:[#allocation5 + $0x16c] sm:$0xf]
    %v184 = vld [vmem:[#allocation5 + $0x170] sm:$0xf]
    %v185 = vld [vmem:[#allocation5 + $0x174] sm:$0xf]
    %v186 = vld [vmem:[#allocation5 + $0x178] sm:$0xf]
    %v187 = vld [vmem:[#allocation5 + $0x17c] sm:$0xf]
    %v236 = vunpack.c.l.b16 %v44
    %v237 = vunpack.c.h.b16 %v44
    %v238 = vunpack.c.l.b16 %v45
    %v239 = vunpack.c.h.b16 %v45
    %v240 = vunpack.c.l.b16 %v46
    %v241 = vunpack.c.h.b16 %v46
    %v242 = vunpack.c.l.b16 %v47
    %v243 = vunpack.c.h.b16 %v47
    %v244 = vunpack.c.l.b16 %v48
    %v245 = vunpack.c.h.b16 %v48
    %v246 = vunpack.c.l.b16 %v49
    %v247 = vunpack.c.h.b16 %v49
    %v248 = vunpack.c.l.b16 %v50
    %v249 = vunpack.c.h.b16 %v50
    %v250 = vunpack.c.l.b16 %v51
    %v251 = vunpack.c.h.b16 %v51
    %v252 = vunpack.c.l.b16 %v52
    %v253 = vunpack.c.h.b16 %v52
    %v254 = vunpack.c.l.b16 %v53
    %v255 = vunpack.c.h.b16 %v53
    %v256 = vunpack.c.l.b16 %v54
    %v257 = vunpack.c.h.b16 %v54
    %v258 = vunpack.c.l.b16 %v55
    %v259 = vunpack.c.h.b16 %v55
    %v260 = vunpack.c.l.b16 %v56
    %v261 = vunpack.c.h.b16 %v56
    %v262 = vunpack.c.l.b16 %v57
    %v263 = vunpack.c.h.b16 %v57
    %v264 = vunpack.c.l.b16 %v58
    %v265 = vunpack.c.h.b16 %v58
    %v266 = vunpack.c.l.b16 %v59
    %v267 = vunpack.c.h.b16 %v59
    %v268 = vunpack.c.l.b16 %v60
    %v269 = vunpack.c.h.b16 %v60
    %v270 = vunpack.c.l.b16 %v61
    %v271 = vunpack.c.h.b16 %v61
    %v272 = vunpack.c.l.b16 %v62
    %v273 = vunpack.c.h.b16 %v62
    %v274 = vunpack.c.l.b16 %v63
    %v275 = vunpack.c.h.b16 %v63
    %v276 = vunpack.c.l.b16 %v64
    %v277 = vunpack.c.h.b16 %v64
    %v278 = vunpack.c.l.b16 %v65
    %v279 = vunpack.c.h.b16 %v65
    %v280 = vunpack.c.l.b16 %v66
    %v281 = vunpack.c.h.b16 %v66
    %v282 = vunpack.c.l.b16 %v67
    %v283 = vunpack.c.h.b16 %v67
    %v284 = vunpack.c.l.b16 %v68
    %v285 = vunpack.c.h.b16 %v68
    %v286 = vunpack.c.l.b16 %v69
    %v287 = vunpack.c.h.b16 %v69
    %v288 = vunpack.c.l.b16 %v70
    %v289 = vunpack.c.h.b16 %v70
    %v290 = vunpack.c.l.b16 %v71
    %v291 = vunpack.c.h.b16 %v71
    %v292 = vunpack.c.l.b16 %v72
    %v293 = vunpack.c.h.b16 %v72
    %v294 = vunpack.c.l.b16 %v73
    %v295 = vunpack.c.h.b16 %v73
    %v296 = vunpack.c.l.b16 %v74
    %v297 = vunpack.c.h.b16 %v74
    %v298 = vunpack.c.l.b16 %v75
    %v299 = vunpack.c.h.b16 %v75
    %v300 = vunpack.c.l.b16 %v76
    %v301 = vunpack.c.h.b16 %v76
    %v302 = vunpack.c.l.b16 %v77
    %v303 = vunpack.c.h.b16 %v77
    %v304 = vunpack.c.l.b16 %v78
    %v305 = vunpack.c.h.b16 %v78
    %v306 = vunpack.c.l.b16 %v79
    %v307 = vunpack.c.h.b16 %v79
    %v308 = vunpack.c.l.b16 %v80
    %v309 = vunpack.c.h.b16 %v80
    %v310 = vunpack.c.l.b16 %v81
    %v311 = vunpack.c.h.b16 %v81
    %v312 = vunpack.c.l.b16 %v82
    %v313 = vunpack.c.h.b16 %v82
    %v314 = vunpack.c.l.b16 %v83
    %v315 = vunpack.c.h.b16 %v83
    %v316 = vunpack.c.l.b16 %v84
    %v317 = vunpack.c.h.b16 %v84
    %v318 = vunpack.c.l.b16 %v85
    %v319 = vunpack.c.h.b16 %v85
    %v320 = vunpack.c.l.b16 %v86
    %v321 = vunpack.c.h.b16 %v86
    %v322 = vunpack.c.l.b16 %v87
    %v323 = vunpack.c.h.b16 %v87
    %v324 = vunpack.c.l.b16 %v88
    %v325 = vunpack.c.h.b16 %v88
    %v326 = vunpack.c.l.b16 %v89
    %v327 = vunpack.c.h.b16 %v89
    %v328 = vunpack.c.l.b16 %v90
    %v329 = vunpack.c.h.b16 %v90
    %v330 = vunpack.c.l.b16 %v91
    %v331 = vunpack.c.h.b16 %v91
    %v332 = vpack.c.b16 %v242, %v236
    %v333 = vpack.c.b16 %v243, %v237
    %v334 = vpack.c.b16 %v244, %v238
    %v335 = vpack.c.b16 %v245, %v239
    %v336 = vpack.c.b16 %v246, %v240
    %v337 = vpack.c.b16 %v247, %v241
    %v338 = vpack.c.b16 %v254, %v248
    %v339 = vpack.c.b16 %v255, %v249
    %v340 = vpack.c.b16 %v256, %v250
    %v341 = vpack.c.b16 %v257, %v251
    %v342 = vpack.c.b16 %v258, %v252
    %v343 = vpack.c.b16 %v259, %v253
    %v344 = vpack.c.b16 %v266, %v260
    %v345 = vpack.c.b16 %v267, %v261
    %v346 = vpack.c.b16 %v268, %v262
    %v347 = vpack.c.b16 %v269, %v263
    %v348 = vpack.c.b16 %v270, %v264
    %v349 = vpack.c.b16 %v271, %v265
    %v350 = vpack.c.b16 %v278, %v272
    %v351 = vpack.c.b16 %v279, %v273
    %v352 = vpack.c.b16 %v280, %v274
    %v353 = vpack.c.b16 %v281, %v275
    %v354 = vpack.c.b16 %v282, %v276
    %v355 = vpack.c.b16 %v283, %v277
    %v356 = vpack.c.b16 %v290, %v284
    %v357 = vpack.c.b16 %v291, %v285
    %v358 = vpack.c.b16 %v292, %v286
    %v359 = vpack.c.b16 %v293, %v287
    %v360 = vpack.c.b16 %v294, %v288
    %v361 = vpack.c.b16 %v295, %v289
    %v362 = vpack.c.b16 %v302, %v296
    %v363 = vpack.c.b16 %v303, %v297
    %v364 = vpack.c.b16 %v304, %v298
    %v365 = vpack.c.b16 %v305, %v299
    %v366 = vpack.c.b16 %v306, %v300
    %v367 = vpack.c.b16 %v307, %v301
    %v368 = vpack.c.b16 %v314, %v308
    %v369 = vpack.c.b16 %v315, %v309
    %v370 = vpack.c.b16 %v316, %v310
    %v371 = vpack.c.b16 %v317, %v311
    %v372 = vpack.c.b16 %v318, %v312
    %v373 = vpack.c.b16 %v319, %v313
    %v374 = vpack.c.b16 %v326, %v320
    %v375 = vpack.c.b16 %v327, %v321
    %v376 = vpack.c.b16 %v328, %v322
    %v377 = vpack.c.b16 %v329, %v323
    %v378 = vpack.c.b16 %v330, %v324
    %v379 = vpack.c.b16 %v331, %v325
    %v524 = vunpack.c.l.b16 %v92
    %v525 = vunpack.c.l.b16 %v93
    %v526 = vunpack.c.l.b16 %v94
    %v527 = vunpack.c.l.b16 %v95
    %v528 = vunpack.c.l.b16 %v96
    %v529 = vunpack.c.l.b16 %v97
    %v530 = vunpack.c.l.b16 %v98
    %v531 = vunpack.c.l.b16 %v99
    %v532 = vunpack.c.l.b16 %v100
    %v533 = vunpack.c.l.b16 %v101
    %v534 = vunpack.c.l.b16 %v102
    %v535 = vunpack.c.l.b16 %v103
    %v536 = vunpack.c.l.b16 %v104
    %v537 = vunpack.c.l.b16 %v105
    %v538 = vunpack.c.l.b16 %v106
    %v539 = vunpack.c.l.b16 %v107
    %v540 = vunpack.c.l.b16 %v108
    %v541 = vunpack.c.l.b16 %v109
    %v542 = vunpack.c.l.b16 %v110
    %v543 = vunpack.c.l.b16 %v111
    %v544 = vunpack.c.l.b16 %v112
    %v545 = vunpack.c.l.b16 %v113
    %v546 = vunpack.c.l.b16 %v114
    %v547 = vunpack.c.l.b16 %v115
    %v548 = vunpack.c.l.b16 %v116
    %v549 = vunpack.c.l.b16 %v117
    %v550 = vunpack.c.l.b16 %v118
    %v551 = vunpack.c.l.b16 %v119
    %v552 = vunpack.c.l.b16 %v120
    %v553 = vunpack.c.l.b16 %v121
    %v554 = vunpack.c.l.b16 %v122
    %v555 = vunpack.c.l.b16 %v123
    %v556 = vunpack.c.l.b16 %v124
    %v557 = vunpack.c.l.b16 %v125
    %v558 = vunpack.c.l.b16 %v126
    %v559 = vunpack.c.l.b16 %v127
    %v560 = vunpack.c.l.b16 %v128
    %v561 = vunpack.c.l.b16 %v129
    %v562 = vunpack.c.l.b16 %v130
    %v563 = vunpack.c.l.b16 %v131
    %v564 = vunpack.c.l.b16 %v132
    %v565 = vunpack.c.l.b16 %v133
    %v566 = vunpack.c.l.b16 %v134
    %v567 = vunpack.c.l.b16 %v135
    %v568 = vunpack.c.l.b16 %v136
    %v569 = vunpack.c.l.b16 %v137
    %v570 = vunpack.c.l.b16 %v138
    %v571 = vunpack.c.l.b16 %v139
    %v572 = vunpack.c.l.b16 %v140
    %v573 = vunpack.c.l.b16 %v141
    %v574 = vunpack.c.l.b16 %v142
    %v575 = vunpack.c.l.b16 %v143
    %v576 = vunpack.c.l.b16 %v144
    %v577 = vunpack.c.l.b16 %v145
    %v578 = vunpack.c.l.b16 %v146
    %v579 = vunpack.c.l.b16 %v147
    %v580 = vunpack.c.l.b16 %v148
    %v581 = vunpack.c.l.b16 %v149
    %v582 = vunpack.c.l.b16 %v150
    %v583 = vunpack.c.l.b16 %v151
    %v584 = vunpack.c.l.b16 %v152
    %v585 = vunpack.c.l.b16 %v153
    %v586 = vunpack.c.l.b16 %v154
    %v587 = vunpack.c.l.b16 %v155
    %v588 = vunpack.c.l.b16 %v156
    %v589 = vunpack.c.l.b16 %v157
    %v590 = vunpack.c.l.b16 %v158
    %v591 = vunpack.c.l.b16 %v159
    %v592 = vunpack.c.l.b16 %v160
    %v593 = vunpack.c.l.b16 %v161
    %v594 = vunpack.c.l.b16 %v162
    %v595 = vunpack.c.l.b16 %v163
    %v596 = vunpack.c.l.b16 %v164
    %v597 = vunpack.c.l.b16 %v165
    %v598 = vunpack.c.l.b16 %v166
    %v599 = vunpack.c.l.b16 %v167
    %v600 = vunpack.c.l.b16 %v168
    %v601 = vunpack.c.l.b16 %v169
    %v602 = vunpack.c.l.b16 %v170
    %v603 = vunpack.c.l.b16 %v171
    %v604 = vunpack.c.l.b16 %v172
    %v605 = vunpack.c.l.b16 %v173
    %v606 = vunpack.c.l.b16 %v174
    %v607 = vunpack.c.l.b16 %v175
    %v608 = vunpack.c.l.b16 %v176
    %v609 = vunpack.c.l.b16 %v177
    %v610 = vunpack.c.l.b16 %v178
    %v611 = vunpack.c.l.b16 %v179
    %v612 = vunpack.c.l.b16 %v180
    %v613 = vunpack.c.l.b16 %v181
    %v614 = vunpack.c.l.b16 %v182
    %v615 = vunpack.c.l.b16 %v183
    %v616 = vunpack.c.l.b16 %v184
    %v617 = vunpack.c.l.b16 %v185
    %v618 = vunpack.c.l.b16 %v186
    %v619 = vunpack.c.l.b16 %v187
    %v620 = vpack.c.b16 %v525, %v524
    %v621 = vpack.c.b16 %v527, %v526
    %v622 = vpack.c.b16 %v529, %v528
    %v623 = vpack.c.b16 %v531, %v530
    %v624 = vpack.c.b16 %v533, %v532
    %v625 = vpack.c.b16 %v535, %v534
    %v626 = vpack.c.b16 %v537, %v536
    %v627 = vpack.c.b16 %v539, %v538
    %v628 = vpack.c.b16 %v541, %v540
    %v629 = vpack.c.b16 %v543, %v542
    %v630 = vpack.c.b16 %v545, %v544
    %v631 = vpack.c.b16 %v547, %v546
    %v632 = vpack.c.b16 %v549, %v548
    %v633 = vpack.c.b16 %v551, %v550
    %v634 = vpack.c.b16 %v553, %v552
    %v635 = vpack.c.b16 %v555, %v554
    %v636 = vpack.c.b16 %v557, %v556
    %v637 = vpack.c.b16 %v559, %v558
    %v638 = vpack.c.b16 %v561, %v560
    %v639 = vpack.c.b16 %v563, %v562
    %v640 = vpack.c.b16 %v565, %v564
    %v641 = vpack.c.b16 %v567, %v566
    %v642 = vpack.c.b16 %v569, %v568
    %v643 = vpack.c.b16 %v571, %v570
    %v644 = vpack.c.b16 %v573, %v572
    %v645 = vpack.c.b16 %v575, %v574
    %v646 = vpack.c.b16 %v577, %v576
    %v647 = vpack.c.b16 %v579, %v578
    %v648 = vpack.c.b16 %v581, %v580
    %v649 = vpack.c.b16 %v583, %v582
    %v650 = vpack.c.b16 %v585, %v584
    %v651 = vpack.c.b16 %v587, %v586
    %v652 = vpack.c.b16 %v589, %v588
    %v653 = vpack.c.b16 %v591, %v590
    %v654 = vpack.c.b16 %v593, %v592
    %v655 = vpack.c.b16 %v595, %v594
    %v656 = vpack.c.b16 %v597, %v596
    %v657 = vpack.c.b16 %v599, %v598
    %v658 = vpack.c.b16 %v601, %v600
    %v659 = vpack.c.b16 %v603, %v602
    %v660 = vpack.c.b16 %v605, %v604
    %v661 = vpack.c.b16 %v607, %v606
    %v662 = vpack.c.b16 %v609, %v608
    %v663 = vpack.c.b16 %v611, %v610
    %v664 = vpack.c.b16 %v613, %v612
    %v665 = vpack.c.b16 %v615, %v614
    %v666 = vpack.c.b16 %v617, %v616
    %v667 = vpack.c.b16 %v619, %v618
    %716 = vmatpush.bf16.msra.mxu0 %v627
    %717 = vmatpush.bf16.msra.mxu0 %v626
    %718 = vmatpush.bf16.msra.mxu0 %v625
    %719 = vmatpush.bf16.msra.mxu0 %v624
    %720 = vmatpush.bf16.msra.mxu0 %v623
    %721 = vmatpush.bf16.msra.mxu0 %v622
    %722 = vmatpush.bf16.msra.mxu0 %v621
    %723 = vmatpush.bf16.msra.mxu0 %v620
    %724 = vmatmul.bf16.gmra.mxu0 %v332
    %v725 = vpop.f32.mrf.mxu0
    %v726 = vadd.f32 0.0, %v725
    %v727 = vpop.f32.mrf.mxu0
    %v728 = vadd.f32 0.0, %v727
    %729 = vmatmul.bf16.gmra.mxu0 %v338
    %v730 = vpop.f32.mrf.mxu0
    %v731 = vadd.f32 0.0, %v730
    %v732 = vpop.f32.mrf.mxu0
    %v733 = vadd.f32 0.0, %v732
    %734 = vmatmul.bf16.gmra.mxu0 %v344
    %v735 = vpop.f32.mrf.mxu0
    %v736 = vadd.f32 0.0, %v735
    %v737 = vpop.f32.mrf.mxu0
    %v738 = vadd.f32 0.0, %v737
    %739 = vmatmul.bf16.gmra.mxu0 %v350
    %v740 = vpop.f32.mrf.mxu0
    %v741 = vadd.f32 0.0, %v740
    %v742 = vpop.f32.mrf.mxu0
    %v743 = vadd.f32 0.0, %v742
    %744 = vmatmul.bf16.gmra.mxu0 %v356
    %v745 = vpop.f32.mrf.mxu0
    %v746 = vadd.f32 0.0, %v745
    %v747 = vpop.f32.mrf.mxu0
    %v748 = vadd.f32 0.0, %v747
    %749 = vmatmul.bf16.gmra.mxu0 %v362
    %v750 = vpop.f32.mrf.mxu0
    %v751 = vadd.f32 0.0, %v750
    %v752 = vpop.f32.mrf.mxu0
    %v753 = vadd.f32 0.0, %v752
    %754 = vmatmul.bf16.gmra.mxu0 %v368
    %v755 = vpop.f32.mrf.mxu0
    %v756 = vadd.f32 0.0, %v755
    %v757 = vpop.f32.mrf.mxu0
    %v758 = vadd.f32 0.0, %v757
    %759 = vmatmul.bf16.gmra.mxu0 %v374
    %v760 = vpop.f32.mrf.mxu0
    %v761 = vadd.f32 0.0, %v760
    %v762 = vpop.f32.mrf.mxu0
    %v763 = vadd.f32 0.0, %v762
    %764 = vdwg.mxu0
    %765 = vmatpush.bf16.msra.mxu0 %v635
    %766 = vmatpush.bf16.msra.mxu0 %v634
    %767 = vmatpush.bf16.msra.mxu0 %v633
    %768 = vmatpush.bf16.msra.mxu0 %v632
    %769 = vmatpush.bf16.msra.mxu0 %v631
    %770 = vmatpush.bf16.msra.mxu0 %v630
    %771 = vmatpush.bf16.msra.mxu0 %v629
    %772 = vmatpush.bf16.msra.mxu0 %v628
    %773 = vmatmul.bf16.gmra.mxu0 %v333
    %v774 = vpop.f32.mrf.mxu0
    %v775 = vadd.f32 %v726, %v774
    %v776 = vpop.f32.mrf.mxu0
    %v777 = vadd.f32 %v728, %v776
    %778 = vmatmul.bf16.gmra.mxu0 %v339
    %v779 = vpop.f32.mrf.mxu0
    %v780 = vadd.f32 %v731, %v779
    %v781 = vpop.f32.mrf.mxu0
    %v782 = vadd.f32 %v733, %v781
    %783 = vmatmul.bf16.gmra.mxu0 %v345
    %v784 = vpop.f32.mrf.mxu0
    %v785 = vadd.f32 %v736, %v784
    %v786 = vpop.f32.mrf.mxu0
    %v787 = vadd.f32 %v738, %v786
    %788 = vmatmul.bf16.gmra.mxu0 %v351
    %v789 = vpop.f32.mrf.mxu0
    %v790 = vadd.f32 %v741, %v789
    %v791 = vpop.f32.mrf.mxu0
    %v792 = vadd.f32 %v743, %v791
    %793 = vmatmul.bf16.gmra.mxu0 %v357
    %v794 = vpop.f32.mrf.mxu0
    %v795 = vadd.f32 %v746, %v794
    %v796 = vpop.f32.mrf.mxu0
    %v797 = vadd.f32 %v748, %v796
    %798 = vmatmul.bf16.gmra.mxu0 %v363
    %v799 = vpop.f32.mrf.mxu0
    %v800 = vadd.f32 %v751, %v799
    %v801 = vpop.f32.mrf.mxu0
    %v802 = vadd.f32 %v753, %v801
    %803 = vmatmul.bf16.gmra.mxu0 %v369
    %v804 = vpop.f32.mrf.mxu0
    %v805 = vadd.f32 %v756, %v804
    %v806 = vpop.f32.mrf.mxu0
    %v807 = vadd.f32 %v758, %v806
    %808 = vmatmul.bf16.gmra.mxu0 %v375
    %v809 = vpop.f32.mrf.mxu0
    %v810 = vadd.f32 %v761, %v809
    %v811 = vpop.f32.mrf.mxu0
    %v812 = vadd.f32 %v763, %v811
    %813 = vdwg.mxu0
    %814 = vmatpush.bf16.msra.mxu0 %v643
    %815 = vmatpush.bf16.msra.mxu0 %v642
    %816 = vmatpush.bf16.msra.mxu0 %v641
    %817 = vmatpush.bf16.msra.mxu0 %v640
    %818 = vmatpush.bf16.msra.mxu0 %v639
    %819 = vmatpush.bf16.msra.mxu0 %v638
    %820 = vmatpush.bf16.msra.mxu0 %v637
    %821 = vmatpush.bf16.msra.mxu0 %v636
    %822 = vmatmul.bf16.gmra.mxu0 %v334
    %v823 = vpop.f32.mrf.mxu0
    %v824 = vadd.f32 %v775, %v823
    %v825 = vpop.f32.mrf.mxu0
    %v826 = vadd.f32 %v777, %v825
    %827 = vmatmul.bf16.gmra.mxu0 %v340
    %v828 = vpop.f32.mrf.mxu0
    %v829 = vadd.f32 %v780, %v828
    %v830 = vpop.f32.mrf.mxu0
    %v831 = vadd.f32 %v782, %v830
    %832 = vmatmul.bf16.gmra.mxu0 %v346
    %v833 = vpop.f32.mrf.mxu0
    %v834 = vadd.f32 %v785, %v833
    %v835 = vpop.f32.mrf.mxu0
    %v836 = vadd.f32 %v787, %v835
    %837 = vmatmul.bf16.gmra.mxu0 %v352
    %v838 = vpop.f32.mrf.mxu0
    %v839 = vadd.f32 %v790, %v838
    %v840 = vpop.f32.mrf.mxu0
    %v841 = vadd.f32 %v792, %v840
    %842 = vmatmul.bf16.gmra.mxu0 %v358
    %v843 = vpop.f32.mrf.mxu0
    %v844 = vadd.f32 %v795, %v843
    %v845 = vpop.f32.mrf.mxu0
    %v846 = vadd.f32 %v797, %v845
    %847 = vmatmul.bf16.gmra.mxu0 %v364
    %v848 = vpop.f32.mrf.mxu0
    %v849 = vadd.f32 %v800, %v848
    %v850 = vpop.f32.mrf.mxu0
    %v851 = vadd.f32 %v802, %v850
    %852 = vmatmul.bf16.gmra.mxu0 %v370
    %v853 = vpop.f32.mrf.mxu0
    %v854 = vadd.f32 %v805, %v853
    %v855 = vpop.f32.mrf.mxu0
    %v856 = vadd.f32 %v807, %v855
    %857 = vmatmul.bf16.gmra.mxu0 %v376
    %v858 = vpop.f32.mrf.mxu0
    %v859 = vadd.f32 %v810, %v858
    %v860 = vpop.f32.mrf.mxu0
    %v861 = vadd.f32 %v812, %v860
    %862 = vdwg.mxu0
    %863 = vmatpush.bf16.msra.mxu0 %v651
    %864 = vmatpush.bf16.msra.mxu0 %v650
    %865 = vmatpush.bf16.msra.mxu0 %v649
    %866 = vmatpush.bf16.msra.mxu0 %v648
    %867 = vmatpush.bf16.msra.mxu0 %v647
    %868 = vmatpush.bf16.msra.mxu0 %v646
    %869 = vmatpush.bf16.msra.mxu0 %v645
    %870 = vmatpush.bf16.msra.mxu0 %v644
    %871 = vmatmul.bf16.gmra.mxu0 %v335
    %v872 = vpop.f32.mrf.mxu0
    %v873 = vadd.f32 %v824, %v872
    %v874 = vpop.f32.mrf.mxu0
    %v875 = vadd.f32 %v826, %v874
    %876 = vmatmul.bf16.gmra.mxu0 %v341
    %v877 = vpop.f32.mrf.mxu0
    %v878 = vadd.f32 %v829, %v877
    %v879 = vpop.f32.mrf.mxu0
    %v880 = vadd.f32 %v831, %v879
    %881 = vmatmul.bf16.gmra.mxu0 %v347
    %v882 = vpop.f32.mrf.mxu0
    %v883 = vadd.f32 %v834, %v882
    %v884 = vpop.f32.mrf.mxu0
    %v885 = vadd.f32 %v836, %v884
    %886 = vmatmul.bf16.gmra.mxu0 %v353
    %v887 = vpop.f32.mrf.mxu0
    %v888 = vadd.f32 %v839, %v887
    %v889 = vpop.f32.mrf.mxu0
    %v890 = vadd.f32 %v841, %v889
    %891 = vmatmul.bf16.gmra.mxu0 %v359
    %v892 = vpop.f32.mrf.mxu0
    %v893 = vadd.f32 %v844, %v892
    %v894 = vpop.f32.mrf.mxu0
    %v895 = vadd.f32 %v846, %v894
    %896 = vmatmul.bf16.gmra.mxu0 %v365
    %v897 = vpop.f32.mrf.mxu0
    %v898 = vadd.f32 %v849, %v897
    %v899 = vpop.f32.mrf.mxu0
    %v900 = vadd.f32 %v851, %v899
    %901 = vmatmul.bf16.gmra.mxu0 %v371
    %v902 = vpop.f32.mrf.mxu0
    %v903 = vadd.f32 %v854, %v902
    %v904 = vpop.f32.mrf.mxu0
    %v905 = vadd.f32 %v856, %v904
    %906 = vmatmul.bf16.gmra.mxu0 %v377
    %v907 = vpop.f32.mrf.mxu0
    %v908 = vadd.f32 %v859, %v907
    %v909 = vpop.f32.mrf.mxu0
    %v910 = vadd.f32 %v861, %v909
    %911 = vdwg.mxu0
    %912 = vmatpush.bf16.msra.mxu0 %v659
    %913 = vmatpush.bf16.msra.mxu0 %v658
    %914 = vmatpush.bf16.msra.mxu0 %v657
    %915 = vmatpush.bf16.msra.mxu0 %v656
    %916 = vmatpush.bf16.msra.mxu0 %v655
    %917 = vmatpush.bf16.msra.mxu0 %v654
    %918 = vmatpush.bf16.msra.mxu0 %v653
    %919 = vmatpush.bf16.msra.mxu0 %v652
    %920 = vmatmul.bf16.gmra.mxu0 %v336
    %v921 = vpop.f32.mrf.mxu0
    %v922 = vadd.f32 %v873, %v921
    %v923 = vpop.f32.mrf.mxu0
    %v924 = vadd.f32 %v875, %v923
    %925 = vmatmul.bf16.gmra.mxu0 %v342
    %v926 = vpop.f32.mrf.mxu0
    %v927 = vadd.f32 %v878, %v926
    %v928 = vpop.f32.mrf.mxu0
    %v929 = vadd.f32 %v880, %v928
    %930 = vmatmul.bf16.gmra.mxu0 %v348
    %v931 = vpop.f32.mrf.mxu0
    %v932 = vadd.f32 %v883, %v931
    %v933 = vpop.f32.mrf.mxu0
    %v934 = vadd.f32 %v885, %v933
    %935 = vmatmul.bf16.gmra.mxu0 %v354
    %v936 = vpop.f32.mrf.mxu0
    %v937 = vadd.f32 %v888, %v936
    %v938 = vpop.f32.mrf.mxu0
    %v939 = vadd.f32 %v890, %v938
    %940 = vmatmul.bf16.gmra.mxu0 %v360
    %v941 = vpop.f32.mrf.mxu0
    %v942 = vadd.f32 %v893, %v941
    %v943 = vpop.f32.mrf.mxu0
    %v944 = vadd.f32 %v895, %v943
    %945 = vmatmul.bf16.gmra.mxu0 %v366
    %v946 = vpop.f32.mrf.mxu0
    %v947 = vadd.f32 %v898, %v946
    %v948 = vpop.f32.mrf.mxu0
    %v949 = vadd.f32 %v900, %v948
    %950 = vmatmul.bf16.gmra.mxu0 %v372
    %v951 = vpop.f32.mrf.mxu0
    %v952 = vadd.f32 %v903, %v951
    %v953 = vpop.f32.mrf.mxu0
    %v954 = vadd.f32 %v905, %v953
    %955 = vmatmul.bf16.gmra.mxu0 %v378
    %v956 = vpop.f32.mrf.mxu0
    %v957 = vadd.f32 %v908, %v956
    %v958 = vpop.f32.mrf.mxu0
    %v959 = vadd.f32 %v910, %v958
    %960 = vdwg.mxu0
    %961 = vmatpush.bf16.msra.mxu0 %v667
    %962 = vmatpush.bf16.msra.mxu0 %v666
    %963 = vmatpush.bf16.msra.mxu0 %v665
    %964 = vmatpush.bf16.msra.mxu0 %v664
    %965 = vmatpush.bf16.msra.mxu0 %v663
    %966 = vmatpush.bf16.msra.mxu0 %v662
    %967 = vmatpush.bf16.msra.mxu0 %v661
    %968 = vmatpush.bf16.msra.mxu0 %v660
    %969 = vmatmul.bf16.gmra.mxu0 %v337
    %v970 = vpop.f32.mrf.mxu0
    %v971 = vadd.f32 %v922, %v970
    %v972 = vpop.f32.mrf.mxu0
    %v973 = vadd.f32 %v924, %v972
    %974 = vmatmul.bf16.gmra.mxu0 %v343
    %v975 = vpop.f32.mrf.mxu0
    %v976 = vadd.f32 %v927, %v975
    %v977 = vpop.f32.mrf.mxu0
    %v978 = vadd.f32 %v929, %v977
    %979 = vmatmul.bf16.gmra.mxu0 %v349
    %v980 = vpop.f32.mrf.mxu0
    %v981 = vadd.f32 %v932, %v980
    %v982 = vpop.f32.mrf.mxu0
    %v983 = vadd.f32 %v934, %v982
    %984 = vmatmul.bf16.gmra.mxu0 %v355
    %v985 = vpop.f32.mrf.mxu0
    %v986 = vadd.f32 %v937, %v985
    %v987 = vpop.f32.mrf.mxu0
    %v988 = vadd.f32 %v939, %v987
    %989 = vmatmul.bf16.gmra.mxu0 %v361
    %v990 = vpop.f32.mrf.mxu0
    %v991 = vadd.f32 %v942, %v990
    %v992 = vpop.f32.mrf.mxu0
    %v993 = vadd.f32 %v944, %v992
    %994 = vmatmul.bf16.gmra.mxu0 %v367
    %v995 = vpop.f32.mrf.mxu0
    %v996 = vadd.f32 %v947, %v995
    %v997 = vpop.f32.mrf.mxu0
    %v998 = vadd.f32 %v949, %v997
    %999 = vmatmul.bf16.gmra.mxu0 %v373
    %v1000 = vpop.f32.mrf.mxu0
    %v1001 = vadd.f32 %v952, %v1000
    %v1002 = vpop.f32.mrf.mxu0
    %v1003 = vadd.f32 %v954, %v1002
    %1004 = vmatmul.bf16.gmra.mxu0 %v379
    %v1005 = vpop.f32.mrf.mxu0
    %v1006 = vadd.f32 %v957, %v1005
    %v1007 = vpop.f32.mrf.mxu0
    %v1008 = vadd.f32 %v959, %v1007
    %1009 = vdwg.mxu0
    %v1010 = vpack.c.bf16 %v971, %v971
    %v1011 = vpack.c.bf16 %v973, %v973
    %v1012 = vpack.c.bf16 %v976, %v976
    %v1013 = vpack.c.bf16 %v978, %v978
    %v1014 = vpack.c.bf16 %v981, %v981
    %v1015 = vpack.c.bf16 %v983, %v983
    %v1016 = vpack.c.bf16 %v986, %v986
    %v1017 = vpack.c.bf16 %v988, %v988
    %v1018 = vpack.c.bf16 %v991, %v991
    %v1019 = vpack.c.bf16 %v993, %v993
    %v1020 = vpack.c.bf16 %v996, %v996
    %v1021 = vpack.c.bf16 %v998, %v998
    %v1022 = vpack.c.bf16 %v1001, %v1001
    %v1023 = vpack.c.bf16 %v1003, %v1003
    %v1024 = vpack.c.bf16 %v1006, %v1006
    %v1025 = vpack.c.bf16 %v1008, %v1008
    %1026 = vst [vmem:[#allocation7] sm:$0xf] %v1010
    %1027 = vst [vmem:[#allocation7 + $0x4] sm:$0xf] %v1011
    %1028 = vst [vmem:[#allocation7 + $0x8] sm:$0xf] %v1012
    %1029 = vst [vmem:[#allocation7 + $0xc] sm:$0xf] %v1013
    %1030 = vst [vmem:[#allocation7 + $0x10] sm:$0xf] %v1014
    %1031 = vst [vmem:[#allocation7 + $0x14] sm:$0xf] %v1015
    %1032 = vst [vmem:[#allocation7 + $0x18] sm:$0xf] %v1016
    %1033 = vst [vmem:[#allocation7 + $0x1c] sm:$0xf] %v1017
    %1034 = vst [vmem:[#allocation7 + $0x20] sm:$0xf] %v1018
    %1035 = vst [vmem:[#allocation7 + $0x24] sm:$0xf] %v1019
    %1036 = vst [vmem:[#allocation7 + $0x28] sm:$0xf] %v1020
    %1037 = vst [vmem:[#allocation7 + $0x2c] sm:$0xf] %v1021
    %1038 = vst [vmem:[#allocation7 + $0x30] sm:$0xf] %v1022
    %1039 = vst [vmem:[#allocation7 + $0x34] sm:$0xf] %v1023
    %1040 = vst [vmem:[#allocation7 + $0x38] sm:$0xf] %v1024
    %1041 = vst [vmem:[#allocation7 + $0x3c] sm:$0xf] %v1025
    // Predicated region
    $region18: #{tpu_custom_call.1} parent=1 // pred_check
      _
    $region19: #{tpu_custom_call.1} parent=1 // pred_check_branch
      %1043 = sbr.rel (0) target = $region21
    $region20: #{tpu_custom_call.1} parent=1 // pred_region
      %1045 = vsyncadd [#allocation4], 0
      %s1046 = sshll.u32 [#allocation7], 4
      %s1047 = int_to_ptr.vmem [resolvable:$true] %s1046
      %s1048 = sshll.u32 %s2, 4
      %s1049 = int_to_ptr.hbm [resolvable:$true] %s1048
      %1054 = dma.vmem_to_hbm [thread:$0]  %s1047, 1024, %s1049, [#allocation4], 64, 64, 4
    $region21: #{tpu_custom_call.1} parent=1 // pred_fallthru
      _
    // Predicated region
    $region22: #{tpu_custom_call.1} parent=1 // pred_check
      _
    $region23: #{tpu_custom_call.1} parent=1 // pred_check_branch
      %1056 = sbr.rel (0) target = $region25
    $region24: #{tpu_custom_call.1} parent=1 // pred_region
      %1058 = dma.done [#allocation4], 1024
    $region25: #{tpu_custom_call.1} parent=1 // pred_fallthru
      _
    %1059 = vsyncpa [#allocation3], 1
    %1060 = vsyncpa [#allocation6], 1
    %1061 = vsyncpa [#allocation4], 1

</llo_original>
